<compile_context>
chip_gen: v7x
topology: tpu7x:2x2x1
jax: 0.10.0
libtpu: 0.0.40
codegen_flags: <defaults>
</compile_context>

<pallas_src>
import functools

import jax
import jax.numpy as jnp
from jax.experimental import pallas as pl
from jax.experimental.pallas import tpu as pltpu

LANE = 128     # lane width of a vreg
SUBLANE = 8    # f32 sublane count


def _round_up(n, m):
    return (n + m - 1) // m * m


def mlp_kernel(x_ref, w1_ref, b1_ref, w2_ref, b2_ref, o_ref):
    # fc1: [tile, in] @ [in, hid_pad] -> f32 accumulate on MXU
    h = jnp.dot(x_ref[...], w1_ref[...], preferred_element_type=jnp.float32)
    h = jnp.maximum(h + b1_ref[...], 0.0)                 # bias + ReLU in f32 (v5e-safe)
    # fc2: [tile, hid_pad] @ [hid_pad, cls_pad] -> f32 accumulate on MXU
    out = jnp.dot(h.astype(w2_ref.dtype), w2_ref[...],
                  preferred_element_type=jnp.float32)
    o_ref[...] = (out + b2_ref[...]).astype(o_ref.dtype)  # lane-dense (cls_pad=128k) store


def prepare_params(w1, b1, w2, b2, param_dtype=jnp.float32):
    """One-time parameter prep (do NOT call per forward).

    PyTorch layout (out_features, in_features) -> (in_features, out_padded),
    biases -> (1, out_padded). Hidden/class dims are zero-padded to multiples of
    128 so in-kernel tiles and the output store are lane-dense; zero padding is
    exact (ReLU(0)=0, padded W2 rows are 0).
    """
    hidden, in_dim = w1.shape
    num_classes = w2.shape[0]
    hid_p = _round_up(hidden, LANE)
    cls_p = _round_up(num_classes, LANE)

    w1_t = jnp.zeros((in_dim, hid_p), param_dtype).at[:, :hidden].set(
        w1.T.astype(param_dtype))
    b1_r = jnp.zeros((1, hid_p), jnp.float32).at[:, :hidden].set(
        b1.astype(jnp.float32))
    w2_t = jnp.zeros((hid_p, cls_p), param_dtype).at[:hidden, :num_classes].set(
        w2.T.astype(param_dtype))
    b2_r = jnp.zeros((1, cls_p), jnp.float32).at[:, :num_classes].set(
        b2.astype(jnp.float32))
    return (w1_t, b1_r, w2_t, b2_r), num_classes


@functools.partial(jax.jit, static_argnames=("num_classes", "batch_tile"))
def neural_net_forward(x, params, num_classes, batch_tile=256):
    """x: (B, input_size) f32.  params: output of prepare_params.  -> (B, num_classes)."""
    w1_t, b1_r, w2_t, b2_r = params
    B, in_dim = x.shape
    hid_p = w1_t.shape[1]
    cls_p = w2_t.shape[1]
    out_dtype = x.dtype

    # Batch tiling: at least 8 rows (f32 sublane), up to `batch_tile` rows per step.
    tile = min(batch_tile, _round_up(B, SUBLANE))
    b_pad = _round_up(B, tile)
    if b_pad != B:
        x = jnp.pad(x, ((0, b_pad - B), (0, 0)))
    x = x.astype(w1_t.dtype)  # bf16 path if params were prepared in bf16

    grid = (b_pad // tile,)
    out = pl.pallas_call(
        mlp_kernel,
        out_shape=jax.ShapeDtypeStruct((b_pad, cls_p), out_dtype),
        grid_spec=pltpu.PrefetchScalarGridSpec(
            num_scalar_prefetch=0,
            grid=grid,
            in_specs=[
                # x tile streams over the batch grid axis
                pl.BlockSpec((tile, in_dim), lambda i: (i, 0)),
                # weights / biases: same block every step -> stay VMEM-resident
                pl.BlockSpec((in_dim, hid_p), lambda i: (0, 0)),
                pl.BlockSpec((1, hid_p), lambda i: (0, 0)),
                pl.BlockSpec((hid_p, cls_p), lambda i: (0, 0)),
                pl.BlockSpec((1, cls_p), lambda i: (0, 0)),
            ],
            out_specs=pl.BlockSpec((tile, cls_p), lambda i: (i, 0)),
        ),
        compiler_params=pltpu.CompilerParams(
            # batch axis is independent -> parallel (2x on v7x's two TCs, neutral elsewhere)
            dimension_semantics=("parallel",),
            # headroom for weight-resident tiling; still within v7x's 64 MiB physical VMEM
            vmem_limit_bytes=64 * 1024 * 1024,
        ),
    )(x, w1_t, b1_r, w2_t, b2_r)

    # Slice away batch / class padding (kernel itself stays lane-dense).
    return out[:B, :num_classes]


if __name__ == "__main__":
    # Small MNIST-like config: input_size=64, hidden=32, classes=10
    batch = 2
    input_size = 64
    hidden_size = 32
    num_classes = 10

    key = jax.random.PRNGKey(0)
    kx, kw1, kb1, kw2, kb2 = jax.random.split(key, 5)

    x = jax.random.normal(kx, (batch, input_size), dtype=jnp.float32)
    # PyTorch nn.Linear parameter shapes / layout.
    w1 = jax.random.normal(kw1, (hidden_size, input_size), dtype=jnp.float32) * 0.1
    b1 = jax.random.normal(kb1, (hidden_size,), dtype=jnp.float32) * 0.1
    w2 = jax.random.normal(kw2, (num_classes, hidden_size), dtype=jnp.float32) * 0.1
    b2 = jax.random.normal(kb2, (num_classes,), dtype=jnp.float32) * 0.1

    # One-time parameter prep (transpose + pad), outside the per-call hot path.
    params, n_cls = prepare_params(w1, b1, w2, b2)

    def ref_fwd(xx):
        return jnp.maximum(xx @ w1.T + b1, 0.0) @ w2.T + b2

    # 1) Tiny batch (exercises batch padding to the 8-row sublane tile).
    out = neural_net_forward(x, params, num_classes=n_cls)
    jax.block_until_ready(out)
    assert out.shape == (batch, num_classes)
    assert jnp.allclose(out, ref_fwd(x), atol=1e-5, rtol=1e-5)

    # 2) Larger batch (exercises multi-step batch grid + VMEM-resident weights).
    x_big = jax.random.normal(kx, (300, input_size), dtype=jnp.float32)
    out_big = neural_net_forward(x_big, params, num_classes=n_cls)
    jax.block_until_ready(out_big)
    assert out_big.shape == (300, num_classes)
    assert jnp.allclose(out_big, ref_fwd(x_big), atol=1e-4, rtol=1e-4)

    print("KERNEL_OK")
</pallas_src>

<mosaic_0001>
module attributes {stable_mosaic.version = 11 : i64} {
  func.func @mlp_kernel(%arg0: i32, %arg1: memref<8x64xf32, #tpu.memory_space<vmem>>, %arg2: memref<64x128xf32, #tpu.memory_space<vmem>>, %arg3: memref<1x128xf32, #tpu.memory_space<vmem>>, %arg4: memref<128x128xf32, #tpu.memory_space<vmem>>, %arg5: memref<1x128xf32, #tpu.memory_space<vmem>>, %arg6: memref<8x128xf32, #tpu.memory_space<vmem>>) attributes {dimension_semantics = [#tpu.dimension_semantics<parallel>], iteration_bounds = array<i64: 1>, scalar_prefetch = 0 : i64, scratch_operands = 0 : i64, tpu.core_type = #tpu.core_type<tc>, window_params = [{transform_indices = @transform_0, window_bounds = array<i64: 8, 64>}, {pipeline_mode = #tpu.pipeline_mode<synchronous>, transform_indices = @transform_1, window_bounds = array<i64: 64, 128>}, {pipeline_mode = #tpu.pipeline_mode<synchronous>, transform_indices = @transform_2, window_bounds = array<i64: 1, 128>}, {pipeline_mode = #tpu.pipeline_mode<synchronous>, transform_indices = @transform_3, window_bounds = array<i64: 128, 128>}, {pipeline_mode = #tpu.pipeline_mode<synchronous>, transform_indices = @transform_4, window_bounds = array<i64: 1, 128>}, {transform_indices = @transform_5, window_bounds = array<i64: 8, 128>}]} {
    %c0 = arith.constant 0 : index
    %c0_0 = arith.constant 0 : index
    %0 = vector.load %arg1[%c0, %c0_0] : memref<8x64xf32, #tpu.memory_space<vmem>>, vector<8x64xf32>
    %c0_1 = arith.constant 0 : index
    %c0_2 = arith.constant 0 : index
    %1 = vector.load %arg2[%c0_1, %c0_2] : memref<64x128xf32, #tpu.memory_space<vmem>>, vector<64x128xf32>
    %cst = arith.constant dense<0.000000e+00> : vector<8x128xf32>
    %2 = tpu.matmul %0, %1, %cst {dimension_numbers = #tpu.dot_dimension_numbers<[1], [0], [0], [1], [0, 0, 1, 1], [], []>} : vector<8x64xf32>, vector<64x128xf32>, vector<8x128xf32> -> vector<8x128xf32>
    %c0_3 = arith.constant 0 : index
    %c0_4 = arith.constant 0 : index
    %3 = vector.load %arg3[%c0_3, %c0_4] : memref<1x128xf32, #tpu.memory_space<vmem>>, vector<1x128xf32>
    %4 = vector.broadcast %3 : vector<1x128xf32> to vector<8x128xf32>
    %5 = arith.addf %2, %4 : vector<8x128xf32>
    %cst_5 = arith.constant 0.000000e+00 : f32
    %6 = vector.broadcast %cst_5 : f32 to vector<8x128xf32>
    %7 = arith.maximumf %5, %6 : vector<8x128xf32>
    %c0_6 = arith.constant 0 : index
    %c0_7 = arith.constant 0 : index
    %8 = vector.load %arg4[%c0_6, %c0_7] : memref<128x128xf32, #tpu.memory_space<vmem>>, vector<128x128xf32>
    %cst_8 = arith.constant dense<0.000000e+00> : vector<8x128xf32>
    %9 = tpu.matmul %7, %8, %cst_8 {dimension_numbers = #tpu.dot_dimension_numbers<[1], [0], [0], [1], [0, 0, 1, 1], [], []>} : vector<8x128xf32>, vector<128x128xf32>, vector<8x128xf32> -> vector<8x128xf32>
    %c0_9 = arith.constant 0 : index
    %c0_10 = arith.constant 0 : index
    %10 = vector.load %arg5[%c0_9, %c0_10] : memref<1x128xf32, #tpu.memory_space<vmem>>, vector<1x128xf32>
    %11 = vector.broadcast %10 : vector<1x128xf32> to vector<8x128xf32>
    %12 = arith.addf %9, %11 : vector<8x128xf32>
    %c0_11 = arith.constant 0 : index
    %c0_12 = arith.constant 0 : index
    %13 = vector.load %arg6[%c0_11, %c0_12] : memref<8x128xf32, #tpu.memory_space<vmem>>, vector<8x128xf32>
    tpu.vector_store %arg6[%c0_11, %c0_12], %12 {strides = array<i32>} : memref<8x128xf32, #tpu.memory_space<vmem>>, vector<8x128xf32>,
    return
  }
  func.func @transform_0(%arg0: i32) -> (i32, i32) {
    %c0_i32 = arith.constant 0 : i32
    %c0_i32_0 = arith.constant 0 : i32
    return %arg0, %c0_i32 : i32, i32
  }
  func.func @transform_1(%arg0: i32) -> (i32, i32) {
    %c0_i32 = arith.constant 0 : i32
    %c0_i32_0 = arith.constant 0 : i32
    %c0_i32_1 = arith.constant 0 : i32
    return %c0_i32, %c0_i32_0 : i32, i32
  }
  func.func @transform_2(%arg0: i32) -> (i32, i32) {
    %c0_i32 = arith.constant 0 : i32
    %c0_i32_0 = arith.constant 0 : i32
    %c0_i32_1 = arith.constant 0 : i32
    return %c0_i32, %c0_i32_0 : i32, i32
  }
  func.func @transform_3(%arg0: i32) -> (i32, i32) {
    %c0_i32 = arith.constant 0 : i32
    %c0_i32_0 = arith.constant 0 : i32
    %c0_i32_1 = arith.constant 0 : i32
    return %c0_i32, %c0_i32_0 : i32, i32
  }
  func.func @transform_4(%arg0: i32) -> (i32, i32) {
    %c0_i32 = arith.constant 0 : i32
    %c0_i32_0 = arith.constant 0 : i32
    %c0_i32_1 = arith.constant 0 : i32
    return %c0_i32, %c0_i32_0 : i32, i32
  }
  func.func @transform_5(%arg0: i32) -> (i32, i32) {
    %c0_i32 = arith.constant 0 : i32
    %c0_i32_0 = arith.constant 0 : i32
    return %arg0, %c0_i32 : i32, i32
  }
}

</mosaic_0001>

<llo_original>
// kernel: neural_net_forward.1
$region0: #{neural_net_forward.1}
  #allocation0 [shape = 'u32[]', space=smem, size = 0x4, offset = 0x4, fixed_abs, tag = 'smem constant byte address 0x4 - core index']
  #allocation1 [shape = 'u32[144,128]{1,0:T(1,128)}', space=vmem, size = 0x12000, scoped, tag = 'internal scratch']
  %s0 = inlined_call_operand.hbm [shape: f32[8,64], index: 0, kind: input, shape index: {}]
  %s1 = inlined_call_operand.hbm [shape: f32[64,128], index: 1, kind: input, shape index: {}]
  %s2 = inlined_call_operand.hbm [shape: f32[1,128], index: 2, kind: input, shape index: {}]
  %s3 = inlined_call_operand.hbm [shape: f32[128,128], index: 3, kind: input, shape index: {}]
  %s4 = inlined_call_operand.hbm [shape: f32[1,128], index: 4, kind: input, shape index: {}]
  %s5 = inlined_call_operand.hbm [shape: f32[8,128], index: 5, kind: output, shape index: {}]
  %s6 = sld [smem:[#allocation0]]
  $region50: #{neural_net_forward.1} parent=0
    _
  %s8 = ssub.s32 1, %s6
  %s9 = scalar_select 0, %s8, %s6
  $region1: #{neural_net_forward.1} parent=0
    #allocation2 [shape = 'u8[4096]{0}', space=vmem, size = 0x1000, scoped, tag = 'input window, operand 0, single buffered']
    #allocation3 [shape = 's32[1]{0}', space=sflag, size = 0x4, scoped, tag = 'scoped memory for neural_net_forward.1']
    #allocation4 [shape = 's32[1]{0}', space=sflag, size = 0x4, scoped, tag = 'scoped memory for neural_net_forward.1']
    #allocation5 [shape = 'u8[32768]{0}', space=vmem, size = 0x8000, scoped, tag = 'input window, operand 1, single buffered']
    #allocation6 [shape = 's32[1]{0}', space=sflag, size = 0x4, scoped, tag = 'scoped memory for neural_net_forward.1']
    #allocation7 [shape = 'u8[512]{0}', space=vmem, size = 0x400, scoped, tag = 'input window, operand 2, single buffered']
    #allocation8 [shape = 'u8[65536]{0}', space=vmem, size = 0x10000, scoped, tag = 'input window, operand 3, single buffered']
    #allocation9 [shape = 's32[1]{0}', space=sflag, size = 0x4, scoped, tag = 'scoped memory for neural_net_forward.1']
    #allocation10 [shape = 'u8[512]{0}', space=vmem, size = 0x400, scoped, tag = 'input window, operand 4, single buffered']
    #allocation11 [shape = 'u8[4096]{0}', space=vmem, size = 0x1000, scoped, tag = 'output window, operand 0, single buffered']
    %10 = vsyncpa [#allocation3], 0
    %11 = vsyncpa [#allocation6], 0
    %12 = vsyncpa [#allocation9], 0
    %13 = vsyncpa [#allocation4], 0
    // Predicated region
    $region2: #{neural_net_forward.1} parent=1 // pred_check
      _
    $region3: #{neural_net_forward.1} parent=1 // pred_check_branch
      %15 = sbr.rel (0) target = $region5
    $region4: #{neural_net_forward.1} parent=1 // pred_region
      %s17 = ssub.s32 128, 128
      %18 = vsyncadd [#allocation3], %s17
      %s20 = sshll.u32 [#allocation2], 4
      %s21 = int_to_ptr.vmem [resolvable:$true] %s20
      %23 = dma.hbm_to_vmem [thread:$0]  %s0, 128, %s21, [#allocation3]
    $region5: #{neural_net_forward.1} parent=1 // pred_fallthru
      _
    // Predicated region
    $region6: #{neural_net_forward.1} parent=1 // pred_check
      _
    $region7: #{neural_net_forward.1} parent=1 // pred_check_branch
      %25 = sbr.rel (0) target = $region9
    $region8: #{neural_net_forward.1} parent=1 // pred_region
      %s27 = ssub.s32 1024, 1024
      %28 = vsyncadd [#allocation6], %s27
      %s29 = sshll.u32 [#allocation5], 4
      %s30 = int_to_ptr.vmem [resolvable:$true] %s29
      %35 = dma.hbm_to_vmem [thread:$0]  %s1, 1024, %s30, [#allocation6], 128, 128, 8
    $region9: #{neural_net_forward.1} parent=1 // pred_fallthru
      _
    // Predicated region
    $region10: #{neural_net_forward.1} parent=1 // pred_check
      _
    $region11: #{neural_net_forward.1} parent=1 // pred_check_branch
      %37 = sbr.rel (0) target = $region13
    $region12: #{neural_net_forward.1} parent=1 // pred_region
      %s39 = ssub.s32 16, 16
      %40 = vsyncadd [#allocation6], %s39
      %s42 = sshll.u32 [#allocation7], 4
      %s43 = int_to_ptr.vmem [resolvable:$true] %s42
      %45 = dma.hbm_to_vmem [thread:$0]  %s2, 16, %s43, [#allocation6]
    $region13: #{neural_net_forward.1} parent=1 // pred_fallthru
      _
    // Predicated region
    $region14: #{neural_net_forward.1} parent=1 // pred_check
      _
    $region15: #{neural_net_forward.1} parent=1 // pred_check_branch
      %47 = sbr.rel (0) target = $region17
    $region16: #{neural_net_forward.1} parent=1 // pred_region
      %s49 = ssub.s32 2048, 2048
      %50 = vsyncadd [#allocation9], %s49
      %s51 = sshll.u32 [#allocation8], 4
      %s52 = int_to_ptr.vmem [resolvable:$true] %s51
      %57 = dma.hbm_to_vmem [thread:$0]  %s3, 2048, %s52, [#allocation9], 128, 128, 8
    $region17: #{neural_net_forward.1} parent=1 // pred_fallthru
      _
    // Predicated region
    $region18: #{neural_net_forward.1} parent=1 // pred_check
      _
    $region19: #{neural_net_forward.1} parent=1 // pred_check_branch
      %59 = sbr.rel (0) target = $region21
    $region20: #{neural_net_forward.1} parent=1 // pred_region
      %s61 = ssub.s32 16, 16
      %62 = vsyncadd [#allocation9], %s61
      %s64 = sshll.u32 [#allocation10], 4
      %s65 = int_to_ptr.vmem [resolvable:$true] %s64
      %67 = dma.hbm_to_vmem [thread:$0]  %s4, 16, %s65, [#allocation9]
    $region21: #{neural_net_forward.1} parent=1 // pred_fallthru
      _
    // Predicated region
    $region22: #{neural_net_forward.1} parent=1 // pred_check
      _
    $region23: #{neural_net_forward.1} parent=1 // pred_check_branch
      %69 = sbr.rel (0) target = $region25
    $region24: #{neural_net_forward.1} parent=1 // pred_region
      %70 = dma.done [#allocation3], 128
    $region25: #{neural_net_forward.1} parent=1 // pred_fallthru
      _
    // Predicated region
    $region26: #{neural_net_forward.1} parent=1 // pred_check
      _
    $region27: #{neural_net_forward.1} parent=1 // pred_check_branch
      %72 = sbr.rel (0) target = $region29
    $region28: #{neural_net_forward.1} parent=1 // pred_region
      %73 = dma.done [#allocation6], 1024
    $region29: #{neural_net_forward.1} parent=1 // pred_fallthru
      _
    // Predicated region
    $region30: #{neural_net_forward.1} parent=1 // pred_check
      _
    $region31: #{neural_net_forward.1} parent=1 // pred_check_branch
      %75 = sbr.rel (0) target = $region33
    $region32: #{neural_net_forward.1} parent=1 // pred_region
      %76 = dma.done [#allocation6], 16
    $region33: #{neural_net_forward.1} parent=1 // pred_fallthru
      _
    // Predicated region
    $region34: #{neural_net_forward.1} parent=1 // pred_check
      _
    $region35: #{neural_net_forward.1} parent=1 // pred_check_branch
      %78 = sbr.rel (0) target = $region37
    $region36: #{neural_net_forward.1} parent=1 // pred_region
      %79 = dma.done [#allocation9], 2048
    $region37: #{neural_net_forward.1} parent=1 // pred_fallthru
      _
    // Predicated region
    $region38: #{neural_net_forward.1} parent=1 // pred_check
      _
    $region39: #{neural_net_forward.1} parent=1 // pred_check_branch
      %81 = sbr.rel (0) target = $region41
    $region40: #{neural_net_forward.1} parent=1 // pred_region
      %82 = dma.done [#allocation9], 16
    $region41: #{neural_net_forward.1} parent=1 // pred_fallthru
      _
    %v83 = vld [vmem:[#allocation2] sm:$0xff]
    %v84 = vld [vmem:[#allocation5] sm:$0xff]
    %v85 = vld [vmem:[#allocation5 + $0x8] sm:$0xff]
    %v86 = vld [vmem:[#allocation5 + $0x10] sm:$0xff]
    %v87 = vld [vmem:[#allocation5 + $0x18] sm:$0xff]
    %v88 = vld [vmem:[#allocation5 + $0x20] sm:$0xff]
    %v89 = vld [vmem:[#allocation5 + $0x28] sm:$0xff]
    %v90 = vld [vmem:[#allocation5 + $0x30] sm:$0xff]
    %v91 = vld [vmem:[#allocation5 + $0x38] sm:$0xff]
    %v92 = vld [vmem:[#allocation7] sm:$0x1]
    %v94 = vlaneseq
    %v95 = vshrl.u32 %v94, 7
    %v96 = vsub.s32 0, %v95
    %v97 = vrot.slane %v92, %v96
    %vm99 = vcmask 523264
    %v101 = vsel %vm99, %v83, 0
    %103 = vmatprep.subr.mxu0 0.0
    %104 = vmatpush1.msra.mxu0 %v84
    %105 = vmatprep.subr.mxu0 0.0
    %106 = vmatpush1.msra.mxu0 %v85
    %107 = vmatprep.subr.mxu0 0.0
    %108 = vmatpush1.msra.mxu0 %v86
    %109 = vmatprep.subr.mxu0 0.0
    %110 = vmatpush1.msra.mxu0 %v87
    %111 = vmatprep.subr.mxu0 0.0
    %112 = vmatpush1.msra.mxu0 %v88
    %113 = vmatprep.subr.mxu0 0.0
    %114 = vmatpush1.msra.mxu0 %v89
    %115 = vmatprep.subr.mxu0 0.0
    %116 = vmatpush1.msra.mxu0 %v90
    %117 = vmatprep.subr.mxu0 0.0
    %118 = vmatpush1.msra.mxu0 %v91
    %119 = vmatprep.subr.mxu0 0.0
    %120 = vmatpush1.msra.mxu0 0.0
    %121 = vmatprep.subr.mxu0 0.0
    %122 = vmatpush1.msra.mxu0 0.0
    %123 = vmatprep.subr.mxu0 0.0
    %124 = vmatpush1.msra.mxu0 0.0
    %125 = vmatprep.subr.mxu0 0.0
    %126 = vmatpush1.msra.mxu0 0.0
    %127 = vmatprep.subr.mxu0 0.0
    %128 = vmatpush1.msra.mxu0 0.0
    %129 = vmatprep.subr.mxu0 0.0
    %130 = vmatpush1.msra.mxu0 0.0
    %131 = vmatprep.subr.mxu0 0.0
    %132 = vmatpush1.msra.mxu0 0.0
    %133 = vmatprep.subr.mxu0 0.0
    %134 = vmatpush1.msra.mxu0 0.0
    %135 = vmatprep.subr.mxu0 0.0
    %136 = vmatpush1.msra.mxu0 0.0
    %137 = vmatprep.subr.mxu0 0.0
    %138 = vmatpush1.msra.mxu0 0.0
    %139 = vmatprep.subr.mxu0 0.0
    %140 = vmatpush1.msra.mxu0 0.0
    %141 = vmatprep.subr.mxu0 0.0
    %142 = vmatpush1.msra.mxu0 0.0
    %143 = vmatprep.subr.mxu0 0.0
    %144 = vmatpush1.msra.mxu0 0.0
    %145 = vmatprep.subr.mxu0 0.0
    %146 = vmatpush1.msra.mxu0 0.0
    %147 = vmatprep.subr.mxu0 0.0
    %148 = vmatpush1.msra.mxu0 0.0
    %149 = vmatprep.subr.mxu0 0.0
    %150 = vmatpush1.msra.mxu0 0.0
    %151 = vmatprep.subr.mxu0 0.0
    %152 = vmatpush1.msra.mxu0 0.0
    %153 = vmatprep.subr.mxu0 0.0
    %154 = vmatpush1.msra.mxu0 0.0
    %155 = vmatprep.subr.mxu0 0.0
    %156 = vmatpush1.msra.mxu0 0.0
    %157 = vmatprep.subr.mxu0 0.0
    %158 = vmatpush1.msra.mxu0 0.0
    %159 = vmatprep.subr.mxu0 0.0
    %160 = vmatpush1.msra.mxu0 0.0
    %161 = vmatprep.subr.mxu0 0.0
    %162 = vmatpush1.msra.mxu0 0.0
    %163 = vmatprep.subr.mxu0 0.0
    %164 = vmatpush1.msra.mxu0 0.0
    %165 = vmatprep.subr.mxu0 0.0
    %166 = vmatpush1.msra.mxu0 0.0
    %167 = vmatprep.mubr.f32.mxu0 0.0
    %168 = vmatmul.mubr.f32.gmra.mrb[0].mxu0 %v101
    %v169 = vpop.f32.mrb[0].mxu0
    %v170 = vadd.f32 %v97, %v169
    %v171 = vpop.f32.mrb[0].mxu0
    %172 = vdwg.mxu0
    %v173 = vmax.f32 %v170, 0.0
    %v174 = vld [vmem:[#allocation8] sm:$0xff]
    %v175 = vld [vmem:[#allocation8 + $0x8] sm:$0xff]
    %v176 = vld [vmem:[#allocation8 + $0x10] sm:$0xff]
    %v177 = vld [vmem:[#allocation8 + $0x18] sm:$0xff]
    %v178 = vld [vmem:[#allocation8 + $0x20] sm:$0xff]
    %v179 = vld [vmem:[#allocation8 + $0x28] sm:$0xff]
    %v180 = vld [vmem:[#allocation8 + $0x30] sm:$0xff]
    %v181 = vld [vmem:[#allocation8 + $0x38] sm:$0xff]
    %v182 = vld [vmem:[#allocation8 + $0x40] sm:$0xff]
    %v183 = vld [vmem:[#allocation8 + $0x48] sm:$0xff]
    %v184 = vld [vmem:[#allocation8 + $0x50] sm:$0xff]
    %v185 = vld [vmem:[#allocation8 + $0x58] sm:$0xff]
    %v186 = vld [vmem:[#allocation8 + $0x60] sm:$0xff]
    %v187 = vld [vmem:[#allocation8 + $0x68] sm:$0xff]
    %v188 = vld [vmem:[#allocation8 + $0x70] sm:$0xff]
    %v189 = vld [vmem:[#allocation8 + $0x78] sm:$0xff]
    %v190 = vld [vmem:[#allocation10] sm:$0x1]
    %v192 = vlaneseq
    %v193 = vshrl.u32 %v192, 7
    %v194 = vsub.s32 0, %v193
    %v195 = vrot.slane %v190, %v194
    %197 = vmatprep.subr.mxu0 0.0
    %198 = vmatpush1.msra.mxu0 %v174
    %199 = vmatprep.subr.mxu0 0.0
    %200 = vmatpush1.msra.mxu0 %v175
    %201 = vmatprep.subr.mxu0 0.0
    %202 = vmatpush1.msra.mxu0 %v176
    %203 = vmatprep.subr.mxu0 0.0
    %204 = vmatpush1.msra.mxu0 %v177
    %205 = vmatprep.subr.mxu0 0.0
    %206 = vmatpush1.msra.mxu0 %v178
    %207 = vmatprep.subr.mxu0 0.0
    %208 = vmatpush1.msra.mxu0 %v179
    %209 = vmatprep.subr.mxu0 0.0
    %210 = vmatpush1.msra.mxu0 %v180
    %211 = vmatprep.subr.mxu0 0.0
    %212 = vmatpush1.msra.mxu0 %v181
    %213 = vmatprep.subr.mxu0 0.0
    %214 = vmatpush1.msra.mxu0 %v182
    %215 = vmatprep.subr.mxu0 0.0
    %216 = vmatpush1.msra.mxu0 %v183
    %217 = vmatprep.subr.mxu0 0.0
    %218 = vmatpush1.msra.mxu0 %v184
    %219 = vmatprep.subr.mxu0 0.0
    %220 = vmatpush1.msra.mxu0 %v185
    %221 = vmatprep.subr.mxu0 0.0
    %222 = vmatpush1.msra.mxu0 %v186
    %223 = vmatprep.subr.mxu0 0.0
    %224 = vmatpush1.msra.mxu0 %v187
    %225 = vmatprep.subr.mxu0 0.0
    %226 = vmatpush1.msra.mxu0 %v188
    %227 = vmatprep.subr.mxu0 0.0
    %228 = vmatpush1.msra.mxu0 %v189
    %229 = vmatprep.subr.mxu0 0.0
    %230 = vmatpush1.msra.mxu0 0.0
    %231 = vmatprep.subr.mxu0 0.0
    %232 = vmatpush1.msra.mxu0 0.0
    %233 = vmatprep.subr.mxu0 0.0
    %234 = vmatpush1.msra.mxu0 0.0
    %235 = vmatprep.subr.mxu0 0.0
    %236 = vmatpush1.msra.mxu0 0.0
    %237 = vmatprep.subr.mxu0 0.0
    %238 = vmatpush1.msra.mxu0 0.0
    %239 = vmatprep.subr.mxu0 0.0
    %240 = vmatpush1.msra.mxu0 0.0
    %241 = vmatprep.subr.mxu0 0.0
    %242 = vmatpush1.msra.mxu0 0.0
    %243 = vmatprep.subr.mxu0 0.0
    %244 = vmatpush1.msra.mxu0 0.0
    %245 = vmatprep.subr.mxu0 0.0
    %246 = vmatpush1.msra.mxu0 0.0
    %247 = vmatprep.subr.mxu0 0.0
    %248 = vmatpush1.msra.mxu0 0.0
    %249 = vmatprep.subr.mxu0 0.0
    %250 = vmatpush1.msra.mxu0 0.0
    %251 = vmatprep.subr.mxu0 0.0
    %252 = vmatpush1.msra.mxu0 0.0
    %253 = vmatprep.subr.mxu0 0.0
    %254 = vmatpush1.msra.mxu0 0.0
    %255 = vmatprep.subr.mxu0 0.0
    %256 = vmatpush1.msra.mxu0 0.0
    %257 = vmatprep.subr.mxu0 0.0
    %258 = vmatpush1.msra.mxu0 0.0
    %259 = vmatprep.subr.mxu0 0.0
    %260 = vmatpush1.msra.mxu0 0.0
    %261 = vmatprep.mubr.f32.mxu0 0.0
    %262 = vmatmul.mubr.f32.gmra.mrb[0].mxu0 %v173
    %v263 = vpop.f32.mrb[0].mxu0
    %v264 = vadd.f32 %v195, %v263
    %v265 = vpop.f32.mrb[0].mxu0
    %266 = vdwg.mxu0
    %267 = vst [vmem:[#allocation11] sm:$0xff] %v264
    // Predicated region
    $region42: #{neural_net_forward.1} parent=1 // pred_check
      _
    $region43: #{neural_net_forward.1} parent=1 // pred_check_branch
      %269 = sbr.rel (0) target = $region45
    $region44: #{neural_net_forward.1} parent=1 // pred_region
      %s271 = ssub.s32 128, 128
      %272 = vsyncadd [#allocation4], %s271
      %s274 = sshll.u32 [#allocation11], 4
      %s275 = int_to_ptr.vmem [resolvable:$true] %s274
      %277 = dma.vmem_to_hbm [thread:$0]  %s275, 128, %s5, [#allocation4]
    $region45: #{neural_net_forward.1} parent=1 // pred_fallthru
      _
    // Predicated region
    $region46: #{neural_net_forward.1} parent=1 // pred_check
      _
    $region47: #{neural_net_forward.1} parent=1 // pred_check_branch
      %279 = sbr.rel (0) target = $region49
    $region48: #{neural_net_forward.1} parent=1 // pred_region
      %280 = dma.done [#allocation4], 128
    $region49: #{neural_net_forward.1} parent=1 // pred_fallthru
      _
    %281 = vsyncpa [#allocation3], 1
    %282 = vsyncpa [#allocation6], 1
    %283 = vsyncpa [#allocation9], 1
    %284 = vsyncpa [#allocation4], 1

</llo_original>
